<compile_context>
chip_gen: v5e
topology: v5e:2x2
jax: 0.10.0
libtpu: 0.0.40
codegen_flags: <defaults>
</compile_context>

<pallas_src>
import numpy as np
import jax
import jax.numpy as jnp
from jax import lax
from jax.experimental import pallas as pl
from jax.experimental.pallas import tpu as pltpu


def _round_up(x, m):
    return ((x + m - 1) // m) * m


def _make_posnet_kernel(num_linears):
    """Kernel body.

    Args: (x_ref, W0, b0, W1, b1, ..., o_ref).
      x_ref : (TB, input_dim)   -- batch on sublanes, features on lanes
      Wl    : (out, in) for hidden layers; (in, 1) for the mean-folded last
              layer (or (1, in) if the last layer is also layer 0)
      bl    : (out, 1) / (1, 1)
      o_ref : (1, TB)           -- lane-dense output block
    """
    # Contract the LAST axis of both operands: (out, in) x (TB, in) -> (out, TB).
    nt_dims = (((1,), (1,)), ((), ()))

    def kernel(x_ref, *refs):
        o_ref = refs[-1]
        params = refs[:-1]

        x_blk = x_ref[...]                            # (TB, input_dim)
        h = None
        for l in range(num_linears):
            w = params[2 * l][...]
            b = params[2 * l + 1][...]
            last = l == num_linears - 1
            if l == 0:
                # No in-kernel transpose of x: contract its feature (lane) axis.
                y = lax.dot_general(w, x_blk, nt_dims,
                                    preferred_element_type=jnp.float32) + b
            elif last:
                # Folded (Linear + mean): weighted sublane reduce (VPU/XLU;
                # MXU dot only worth it if a bundle dump shows slot saturation).
                y = jnp.sum(h * w, axis=0, keepdims=True) + b
            else:
                y = jnp.dot(w, h, preferred_element_type=jnp.float32) + b

            if last:
                o_ref[...] = y                        # (1, TB), unmasked stores
            else:
                h = jnp.maximum(y, 0.0)               # nn.ReLU

    return kernel


def init_params(key, input_dim, output_dim, hidden_dim, n_layers, skip_in=(4,)):
    """Params mirroring nn.Linear default init (U(-1/sqrt(in), 1/sqrt(in))).

    Weights use the PyTorch (out, in) convention; biases are (out,).  The
    out_dim widening matches the PyTorch __init__ exactly.
    """
    dims = [input_dim] + [hidden_dim] * n_layers + [output_dim]
    weights, biases = [], []
    for l in range(n_layers + 1):
        if (l + 1) in skip_in:
            out_dim = dims[l + 1] + dims[0]
            dims[l + 1] = out_dim
        else:
            out_dim = dims[l + 1]
        in_dim = dims[l]
        key, wk, bk = jax.random.split(key, 3)
        bound = 1.0 / np.sqrt(in_dim)
        w = jax.random.uniform(wk, (out_dim, in_dim), jnp.float32, -bound, bound)
        b = jax.random.uniform(bk, (out_dim,), jnp.float32, -bound, bound)
        weights.append(w)
        biases.append(b)
    return weights, biases


def pos_network_forward(x, weights, biases, skip_in=(4,), batch_tile=4096):
    B, input_dim = x.shape
    num_linears = len(weights)
    skip_flags = tuple((l + 1) in skip_in for l in range(num_linears))
    # TODO(synk): the reference module's skip path is shape-inconsistent with
    # its own __init__ when it fires (torch.cat widens x past lin.in_features,
    # so the PyTorch forward itself raises).  We therefore only support configs
    # where the skip never triggers (e.g. skip_in=(4,) with n_layers=2).
    if any(skip_flags):
        raise NotImplementedError(
            "skip_in fires for a layer; the reference PyTorch module errors on "
            "this configuration (cat widens x past lin.in_features).")

    # ---- Batch tile: large, lane-aligned, pad-to-tile; keep >= 2 parallel grid
    # steps when the batch can be split so v7x megacore uses both TensorCores.
    batch_tile = max(128, _round_up(int(batch_tile), 128))
    B128 = _round_up(max(B, 1), 128)
    TB = min(batch_tile, B128)
    if B128 >= 256 and pl.cdiv(B128, TB) < 2:
        TB = _round_up(pl.cdiv(B128, 2), 128)
    B_pad = _round_up(B, TB)
    grid = (B_pad // TB,)

    # ---- Effective kernel params: PyTorch (out, in) weights used directly;
    # final Linear + mean(dim=1) folded into one per-feature column.
    flat_params = []
    mac_elems = 0
    hidden_max = input_dim
    for l in range(num_linears):
        w = weights[l].astype(jnp.float32)            # (out, in)
        b = biases[l].astype(jnp.float32)             # (out,)
        if l == num_linears - 1:
            w_eff = jnp.mean(w, axis=0)               # (in,) : mean is linear
            b_eff = jnp.mean(b).reshape(1, 1)         # (1, 1)
            w_eff = w_eff[None, :] if num_linears == 1 else w_eff[:, None]
            flat_params += [w_eff, b_eff]
        else:
            flat_params += [w, b[:, None]]            # bias broadcasts on lanes
            hidden_max = max(hidden_max, int(w.shape[0]))
        mac_elems += int(flat_params[2 * l].size)

    x32 = x.astype(jnp.float32)
    if B_pad != B:
        # Padded rows compute garbage that is sliced away; keeps the fast,
        # lane-dense, large-tile path for every batch size.
        x32 = jnp.pad(x32, ((0, B_pad - B), (0, 0)))

    in_specs = [pl.BlockSpec((TB, input_dim), lambda i: (i, 0))]
    for p in flat_params:
        in_specs.append(pl.BlockSpec(p.shape, lambda i: (0, 0)))  # VMEM-resident

    param_bytes = sum(int(p.size) * 4 for p in flat_params)
    cost = pl.CostEstimate(
        flops=2 * B_pad * int(mac_elems),
        transcendentals=0,
        bytes_accessed=4 * (B_pad * input_dim + B_pad) + param_bytes,
    )

    # Per-tile VMEM working set: double-buffered x/out blocks, resident params,
    # plus headroom for a few (hidden, TB) f32 temporaries.  Explicit limit so
    # large-TB sweeps clear v5e's 16 MiB default scoped VMEM; clamped under
    # v7x's 64 MiB physical VMEM.
    est_bytes = (2 * TB * input_dim * 4 + 2 * TB * 4 + 2 * param_bytes
                 + 6 * hidden_max * TB * 4)
    vmem_limit = int(min(max(32 << 20, 2 * est_bytes), 64 << 20))

    kernel = _make_posnet_kernel(num_linears)

    out = pl.pallas_call(
        kernel,
        out_shape=jax.ShapeDtypeStruct((1, B_pad), jnp.float32),
        grid=grid,
        in_specs=in_specs,
        out_specs=pl.BlockSpec((1, TB), lambda i: (0, i)),
        compiler_params=pltpu.CompilerParams(
            dimension_semantics=("parallel",),
            vmem_limit_bytes=vmem_limit),
        cost_estimate=cost,
    )(x32, *flat_params)
    return out[0, :B]


def pos_network_reference(x, weights, biases, skip_in=(4,)):
    """Pure-JAX reference mirroring the PyTorch forward (weights in (out, in))."""
    num_linears = len(weights)
    inputs = x
    h = x
    for l in range(num_linears):
        if (l + 1) in skip_in:
            h = jnp.concatenate([h, inputs], axis=1) / np.sqrt(2.0)
        h = jnp.dot(h, weights[l].T, precision=jax.lax.Precision.HIGHEST) + biases[l]
        if l < num_linears - 1:
            h = jnp.maximum(h, 0.0)
    return h.mean(axis=1)


if __name__ == "__main__":
    input_dim, output_dim, hidden_dim, n_layers = 4, 16, 32, 2

    key = jax.random.PRNGKey(0)
    key, xk, pk, sk = jax.random.split(key, 4)
    weights, biases = init_params(pk, input_dim, output_dim, hidden_dim, n_layers)

    # Main run: B = 512 -> TB = 256, grid = (2,) (tiled path, 2 parallel steps).
    B = 512
    x = jax.random.normal(xk, (B, input_dim), dtype=jnp.float32)
    out = jax.block_until_ready(pos_network_forward(x, weights, biases))
    ref = jax.block_until_ready(pos_network_reference(x, weights, biases))
    assert out.shape == (B,), out.shape
    np.testing.assert_allclose(np.asarray(out), np.asarray(ref), rtol=1e-4, atol=1e-4)

    # Small / non-tile-multiple batch: exercises the pad-to-tile path (8 -> 128).
    x_small = jax.random.normal(sk, (8, input_dim), dtype=jnp.float32)
    out_s = jax.block_until_ready(pos_network_forward(x_small, weights, biases))
    ref_s = jax.block_until_ready(pos_network_reference(x_small, weights, biases))
    np.testing.assert_allclose(np.asarray(out_s), np.asarray(ref_s), rtol=1e-4, atol=1e-4)

    print("KERNEL_OK")
</pallas_src>

<mosaic_0001>
module attributes {stable_mosaic.version = 11 : i64} {
  func.func @kernel(%arg0: i32, %arg1: memref<256x4xf32, #tpu.memory_space<vmem>>, %arg2: memref<32x4xf32, #tpu.memory_space<vmem>>, %arg3: memref<32x1xf32, #tpu.memory_space<vmem>>, %arg4: memref<32x32xf32, #tpu.memory_space<vmem>>, %arg5: memref<32x1xf32, #tpu.memory_space<vmem>>, %arg6: memref<32x1xf32, #tpu.memory_space<vmem>>, %arg7: memref<1x1xf32, #tpu.memory_space<vmem>>, %arg8: memref<1x256xf32, #tpu.memory_space<vmem>>) attributes {dimension_semantics = [#tpu.dimension_semantics<parallel>], iteration_bounds = array<i64: 2>, scalar_prefetch = 0 : i64, scratch_operands = 0 : i64, tpu.core_type = #tpu.core_type<tc>, window_params = [{transform_indices = @transform_0, window_bounds = array<i64: 256, 4>}, {pipeline_mode = #tpu.pipeline_mode<synchronous>, transform_indices = @transform_1, window_bounds = array<i64: 32, 4>}, {pipeline_mode = #tpu.pipeline_mode<synchronous>, transform_indices = @transform_2, window_bounds = array<i64: 32, 1>}, {pipeline_mode = #tpu.pipeline_mode<synchronous>, transform_indices = @transform_3, window_bounds = array<i64: 32, 32>}, {pipeline_mode = #tpu.pipeline_mode<synchronous>, transform_indices = @transform_4, window_bounds = array<i64: 32, 1>}, {pipeline_mode = #tpu.pipeline_mode<synchronous>, transform_indices = @transform_5, window_bounds = array<i64: 32, 1>}, {pipeline_mode = #tpu.pipeline_mode<synchronous>, transform_indices = @transform_6, window_bounds = array<i64: 1, 1>}, {transform_indices = @transform_7, window_bounds = array<i64: 1, 256>}]} {
    %c0 = arith.constant 0 : index
    %c0_0 = arith.constant 0 : index
    %0 = vector.load %arg1[%c0, %c0_0] : memref<256x4xf32, #tpu.memory_space<vmem>>, vector<256x4xf32>
    %c0_1 = arith.constant 0 : index
    %c0_2 = arith.constant 0 : index
    %1 = vector.load %arg2[%c0_1, %c0_2] : memref<32x4xf32, #tpu.memory_space<vmem>>, vector<32x4xf32>
    %c0_3 = arith.constant 0 : index
    %c0_4 = arith.constant 0 : index
    %2 = vector.load %arg3[%c0_3, %c0_4] : memref<32x1xf32, #tpu.memory_space<vmem>>, vector<32x1xf32>
    %cst = arith.constant dense<0.000000e+00> : vector<32x256xf32>
    %3 = tpu.matmul %1, %0, %cst {dimension_numbers = #tpu.dot_dimension_numbers<[1], [1], [0], [0], [0, 0, 1, 0], [], []>} : vector<32x4xf32>, vector<256x4xf32>, vector<32x256xf32> -> vector<32x256xf32>
    %4 = vector.broadcast %2 : vector<32x1xf32> to vector<32x256xf32>
    %5 = arith.addf %3, %4 : vector<32x256xf32>
    %cst_5 = arith.constant 0.000000e+00 : f32
    %6 = vector.broadcast %cst_5 : f32 to vector<32x256xf32>
    %7 = arith.maximumf %5, %6 : vector<32x256xf32>
    %c0_6 = arith.constant 0 : index
    %c0_7 = arith.constant 0 : index
    %8 = vector.load %arg4[%c0_6, %c0_7] : memref<32x32xf32, #tpu.memory_space<vmem>>, vector<32x32xf32>
    %c0_8 = arith.constant 0 : index
    %c0_9 = arith.constant 0 : index
    %9 = vector.load %arg5[%c0_8, %c0_9] : memref<32x1xf32, #tpu.memory_space<vmem>>, vector<32x1xf32>
    %cst_10 = arith.constant dense<0.000000e+00> : vector<32x256xf32>
    %10 = tpu.matmul %8, %7, %cst_10 {dimension_numbers = #tpu.dot_dimension_numbers<[1], [0], [0], [1], [0, 0, 1, 1], [], []>} : vector<32x32xf32>, vector<32x256xf32>, vector<32x256xf32> -> vector<32x256xf32>
    %11 = vector.broadcast %9 : vector<32x1xf32> to vector<32x256xf32>
    %12 = arith.addf %10, %11 : vector<32x256xf32>
    %cst_11 = arith.constant 0.000000e+00 : f32
    %13 = vector.broadcast %cst_11 : f32 to vector<32x256xf32>
    %14 = arith.maximumf %12, %13 : vector<32x256xf32>
    %c0_12 = arith.constant 0 : index
    %c0_13 = arith.constant 0 : index
    %15 = vector.load %arg6[%c0_12, %c0_13] : memref<32x1xf32, #tpu.memory_space<vmem>>, vector<32x1xf32>
    %c0_14 = arith.constant 0 : index
    %c0_15 = arith.constant 0 : index
    %16 = vector.load %arg7[%c0_14, %c0_15] : memref<1x1xf32, #tpu.memory_space<vmem>>, vector<1x1xf32>
    %17 = vector.broadcast %15 : vector<32x1xf32> to vector<32x256xf32>
    %18 = arith.mulf %14, %17 : vector<32x256xf32>
    %cst_16 = arith.constant dense<0.000000e+00> : vector<256xf32>
    %19 = vector.multi_reduction <add>, %18, %cst_16 [0] : vector<32x256xf32> to vector<256xf32>
    %20 = vector.shape_cast %19 : vector<256xf32> to vector<1x256xf32>
    %21 = vector.broadcast %16 : vector<1x1xf32> to vector<1x256xf32>
    %22 = arith.addf %20, %21 : vector<1x256xf32>
    %c0_17 = arith.constant 0 : index
    %c0_18 = arith.constant 0 : index
    %23 = vector.load %arg8[%c0_17, %c0_18] : memref<1x256xf32, #tpu.memory_space<vmem>>, vector<1x256xf32>
    tpu.vector_store %arg8[%c0_17, %c0_18], %22 {strides = array<i32>} : memref<1x256xf32, #tpu.memory_space<vmem>>, vector<1x256xf32>,
    return
  }
  func.func @transform_0(%arg0: i32) -> (i32, i32) {
    %c0_i32 = arith.constant 0 : i32
    %c0_i32_0 = arith.constant 0 : i32
    return %arg0, %c0_i32 : i32, i32
  }
  func.func @transform_1(%arg0: i32) -> (i32, i32) {
    %c0_i32 = arith.constant 0 : i32
    %c0_i32_0 = arith.constant 0 : i32
    %c0_i32_1 = arith.constant 0 : i32
    return %c0_i32, %c0_i32_0 : i32, i32
  }
  func.func @transform_2(%arg0: i32) -> (i32, i32) {
    %c0_i32 = arith.constant 0 : i32
    %c0_i32_0 = arith.constant 0 : i32
    %c0_i32_1 = arith.constant 0 : i32
    return %c0_i32, %c0_i32_0 : i32, i32
  }
  func.func @transform_3(%arg0: i32) -> (i32, i32) {
    %c0_i32 = arith.constant 0 : i32
    %c0_i32_0 = arith.constant 0 : i32
    %c0_i32_1 = arith.constant 0 : i32
    return %c0_i32, %c0_i32_0 : i32, i32
  }
  func.func @transform_4(%arg0: i32) -> (i32, i32) {
    %c0_i32 = arith.constant 0 : i32
    %c0_i32_0 = arith.constant 0 : i32
    %c0_i32_1 = arith.constant 0 : i32
    return %c0_i32, %c0_i32_0 : i32, i32
  }
  func.func @transform_5(%arg0: i32) -> (i32, i32) {
    %c0_i32 = arith.constant 0 : i32
    %c0_i32_0 = arith.constant 0 : i32
    %c0_i32_1 = arith.constant 0 : i32
    return %c0_i32, %c0_i32_0 : i32, i32
  }
  func.func @transform_6(%arg0: i32) -> (i32, i32) {
    %c0_i32 = arith.constant 0 : i32
    %c0_i32_0 = arith.constant 0 : i32
    %c0_i32_1 = arith.constant 0 : i32
    return %c0_i32, %c0_i32_0 : i32, i32
  }
  func.func @transform_7(%arg0: i32) -> (i32, i32) {
    %c0_i32 = arith.constant 0 : i32
    %c0_i32_0 = arith.constant 0 : i32
    return %c0_i32, %arg0 : i32, i32
  }
}

</mosaic_0001>

<llo_original>
// kernel: tpu_custom_call.1
$region0: #{tpu_custom_call.1}
  #allocation0 [shape = 'u32[]', space=smem, size = 0x4, offset = 0x4, fixed_abs, tag = 'smem constant byte address 0x4 - core index']
  #allocation1 [shape = 'u32[72,128]{1,0:T(1,128)}', space=vmem, size = 0x9000, scoped, tag = 'internal scratch']
  #allocation2 [shape = 'f32[1,1]{1,0:T(1,128)S(1)}', space=vmem, size = 0x200, scoped, tag = 'scoped memory for tpu_custom_call.1']
  %s0 = inlined_call_operand.vmem [shape: f32[512,4], index: 0, kind: input, shape index: {}]
  %s1 = inlined_call_operand.vmem [shape: f32[32,4], index: 1, kind: input, shape index: {}]
  %s2 = inlined_call_operand.vmem [shape: f32[32,1], index: 2, kind: input, shape index: {}]
  %s3 = inlined_call_operand.vmem [shape: f32[32,32], index: 3, kind: input, shape index: {}]
  %s4 = inlined_call_operand.vmem [shape: f32[32,1], index: 4, kind: input, shape index: {}]
  %s5 = inlined_call_operand.vmem [shape: f32[32,1], index: 5, kind: input, shape index: {}]
  %s6 = inlined_call_operand.<no memory space> [shape: f32[1,1], index: 6, kind: input, shape index: {}]
  %s7 = inlined_call_operand.hbm [shape: f32[1,512], index: 7, kind: output, shape index: {}]
  %s8 = sld [smem:[#allocation0]]
  $region61: #{tpu_custom_call.1} parent=0
    _
  %s10 = ssub.s32 1, %s8
  %s11 = scalar_select 0, %s10, %s8
  %v12 = vstv %s6
  %13 = vst [vmem:[#allocation2] sm:$0x1] %v12
  $region1: #{tpu_custom_call.1} parent=0
    #allocation3 [shape = 'u8[2048]{0}', space=vmem, size = 0x800, scoped, tag = 'output window, operand 0']
    #allocation4 [shape = 's32[2]{0}', space=sflag, size = 0x8, scoped, tag = 'scoped memory for tpu_custom_call.1']
    %14 = vsyncpa [#allocation4], 0
    %s15 = scalar_lea.sflag [#allocation4], 1
    %16 = vsyncpa %s15, 0
    loop: start=0, step=1, limit=4
    $region2: #{tpu_custom_call.1} parent=1 // loop_pre_header
      _
    $region3: #{tpu_custom_call.1} parent=1 // loop_header
      %s18 = sphi 0, %s22
      %p19 = scmp.ge.s32.totalorder %s18, 4
      %s28 = sphi 0, %s30
      %s31 = sphi 0, %s28
      %s32 = sphi 0, %s31
      %s48 = sphi 0, %s32
      %s52 = sphi 0, %s52
      %s54 = sphi 0, %s52
      %s55 = sphi 0, %s54
      %s69 = sphi 0, %s55
      %s73 = sphi 0, %s73
      %s75 = sphi 0, %s73
      %s76 = sphi 0, %s75
      %s90 = sphi 0, %s76
      %s94 = sphi 0, %s94
      %s96 = sphi 0, %s94
      %s97 = sphi 0, %s96
      %s111 = sphi 0, %s97
      %s115 = sphi 0, %s115
      %s117 = sphi 0, %s115
      %s118 = sphi 0, %s117
      %s132 = sphi 0, %s118
      %s136 = sphi 0, %s136
      %s138 = sphi 0, %s136
      %s139 = sphi 0, %s138
      %s153 = sphi 0, %s139
      %s157 = sphi 0, %s157
      %s159 = sphi 0, %s157
      %s160 = sphi 0, %s159
      %s174 = sphi 0, %s160
      %s180 = sphi 0, %s182
      %s183 = sphi 0, %s180
      %s184 = sphi 0, %s183
      %s200 = sphi 0, %s184
    $region4: #{tpu_custom_call.1} parent=1 // loop_header_branch
      %21 = sbr.rel (%p19) target = $region8
    $region5: #{tpu_custom_call.1} parent=1 // loop_body
      %s23 = ssub.s32 %s18, 1
      %s24 = ssub.s32 %s18, 2
      %s25 = sadd.s32 %s18, 1
      %s26 = ssub.s32 %s18, %s25
      %p27 = scmp.eq.s32.totalorder %s26, 0
      %s29 = sadd.s32 %s28, 1
      %s30 = scalar_select %p27, %s28, %s29
      %p33 = pneg %p27
      %p34 = scmp.eq.s32.totalorder %s18, 1
      %p35 = por %p33, %p34
      %p36 = scmp.ne.s32.totalorder %s28, %s31
      %p37 = scmp.eq.s32.totalorder %s18, 0
      %p38 = por %p36, %p37
      %p39 = scmp.ne.s32.totalorder %s28, %s31
      %p40 = scmp.eq.s32.totalorder %s23, 1
      %p41 = por %p39, %p40
      %p42 = scmp.ne.s32.totalorder %s31, %s32
      %p43 = scmp.eq.s32.totalorder %s23, 0
      %p44 = por %p42, %p43
      %p45 = scmp.ne.s32.totalorder %s31, %s32
      %p46 = scmp.eq.s32.totalorder %s24, 1
      %p47 = por %p45, %p46
      %p49 = scmp.ne.s32.totalorder %s32, %s48
      %p50 = scmp.eq.s32.totalorder %s24, 0
      %p51 = por %p49, %p50
      %s53 = sadd.s32 %s52, 1
      %p56 = scmp.eq.s32.totalorder %s18, 1
      %p57 = scmp.ne.s32.totalorder %s52, %s54
      %p58 = scmp.eq.s32.totalorder %s18, 0
      %p59 = por %p57, %p58
      %p60 = scmp.ne.s32.totalorder %s52, %s54
      %p61 = scmp.eq.s32.totalorder %s23, 1
      %p62 = por %p60, %p61
      %p63 = scmp.ne.s32.totalorder %s54, %s55
      %p64 = scmp.eq.s32.totalorder %s23, 0
      %p65 = por %p63, %p64
      %p66 = scmp.ne.s32.totalorder %s54, %s55
      %p67 = scmp.eq.s32.totalorder %s24, 1
      %p68 = por %p66, %p67
      %p70 = scmp.ne.s32.totalorder %s55, %s69
      %p71 = scmp.eq.s32.totalorder %s24, 0
      %p72 = por %p70, %p71
      %s74 = sadd.s32 %s73, 1
      %p77 = scmp.eq.s32.totalorder %s18, 1
      %p78 = scmp.ne.s32.totalorder %s73, %s75
      %p79 = scmp.eq.s32.totalorder %s18, 0
      %p80 = por %p78, %p79
      %p81 = scmp.ne.s32.totalorder %s73, %s75
      %p82 = scmp.eq.s32.totalorder %s23, 1
      %p83 = por %p81, %p82
      %p84 = scmp.ne.s32.totalorder %s75, %s76
      %p85 = scmp.eq.s32.totalorder %s23, 0
      %p86 = por %p84, %p85
      %p87 = scmp.ne.s32.totalorder %s75, %s76
      %p88 = scmp.eq.s32.totalorder %s24, 1
      %p89 = por %p87, %p88
      %p91 = scmp.ne.s32.totalorder %s76, %s90
      %p92 = scmp.eq.s32.totalorder %s24, 0
      %p93 = por %p91, %p92
      %s95 = sadd.s32 %s94, 1
      %p98 = scmp.eq.s32.totalorder %s18, 1
      %p99 = scmp.ne.s32.totalorder %s94, %s96
      %p100 = scmp.eq.s32.totalorder %s18, 0
      %p101 = por %p99, %p100
      %p102 = scmp.ne.s32.totalorder %s94, %s96
      %p103 = scmp.eq.s32.totalorder %s23, 1
      %p104 = por %p102, %p103
      %p105 = scmp.ne.s32.totalorder %s96, %s97
      %p106 = scmp.eq.s32.totalorder %s23, 0
      %p107 = por %p105, %p106
      %p108 = scmp.ne.s32.totalorder %s96, %s97
      %p109 = scmp.eq.s32.totalorder %s24, 1
      %p110 = por %p108, %p109
      %p112 = scmp.ne.s32.totalorder %s97, %s111
      %p113 = scmp.eq.s32.totalorder %s24, 0
      %p114 = por %p112, %p113
      %s116 = sadd.s32 %s115, 1
      %p119 = scmp.eq.s32.totalorder %s18, 1
      %p120 = scmp.ne.s32.totalorder %s115, %s117
      %p121 = scmp.eq.s32.totalorder %s18, 0
      %p122 = por %p120, %p121
      %p123 = scmp.ne.s32.totalorder %s115, %s117
      %p124 = scmp.eq.s32.totalorder %s23, 1
      %p125 = por %p123, %p124
      %p126 = scmp.ne.s32.totalorder %s117, %s118
      %p127 = scmp.eq.s32.totalorder %s23, 0
      %p128 = por %p126, %p127
      %p129 = scmp.ne.s32.totalorder %s117, %s118
      %p130 = scmp.eq.s32.totalorder %s24, 1
      %p131 = por %p129, %p130
      %p133 = scmp.ne.s32.totalorder %s118, %s132
      %p134 = scmp.eq.s32.totalorder %s24, 0
      %p135 = por %p133, %p134
      %s137 = sadd.s32 %s136, 1
      %p140 = scmp.eq.s32.totalorder %s18, 1
      %p141 = scmp.ne.s32.totalorder %s136, %s138
      %p142 = scmp.eq.s32.totalorder %s18, 0
      %p143 = por %p141, %p142
      %p144 = scmp.ne.s32.totalorder %s136, %s138
      %p145 = scmp.eq.s32.totalorder %s23, 1
      %p146 = por %p144, %p145
      %p147 = scmp.ne.s32.totalorder %s138, %s139
      %p148 = scmp.eq.s32.totalorder %s23, 0
      %p149 = por %p147, %p148
      %p150 = scmp.ne.s32.totalorder %s138, %s139
      %p151 = scmp.eq.s32.totalorder %s24, 1
      %p152 = por %p150, %p151
      %p154 = scmp.ne.s32.totalorder %s139, %s153
      %p155 = scmp.eq.s32.totalorder %s24, 0
      %p156 = por %p154, %p155
      %s158 = sadd.s32 %s157, 1
      %p161 = scmp.eq.s32.totalorder %s18, 1
      %p162 = scmp.ne.s32.totalorder %s157, %s159
      %p163 = scmp.eq.s32.totalorder %s18, 0
      %p164 = por %p162, %p163
      %p165 = scmp.ne.s32.totalorder %s157, %s159
      %p166 = scmp.eq.s32.totalorder %s23, 1
      %p167 = por %p165, %p166
      %p168 = scmp.ne.s32.totalorder %s159, %s160
      %p169 = scmp.eq.s32.totalorder %s23, 0
      %p170 = por %p168, %p169
      %p171 = scmp.ne.s32.totalorder %s159, %s160
      %p172 = scmp.eq.s32.totalorder %s24, 1
      %p173 = por %p171, %p172
      %p175 = scmp.ne.s32.totalorder %s160, %s174
      %p176 = scmp.eq.s32.totalorder %s24, 0
      %p177 = por %p175, %p176
      %s178 = ssub.s32 %s18, %s25
      %p179 = scmp.eq.s32.totalorder %s178, 0
      %s181 = sadd.s32 %s180, 1
      %s182 = scalar_select %p179, %s180, %s181
      %p185 = pneg %p179
      %p186 = scmp.eq.s32.totalorder %s18, 1
      %p187 = por %p185, %p186
      %p188 = scmp.ne.s32.totalorder %s180, %s183
      %p189 = scmp.eq.s32.totalorder %s18, 0
      %p190 = por %p188, %p189
      %p191 = scmp.ne.s32.totalorder %s180, %s183
      %p192 = scmp.eq.s32.totalorder %s23, 1
      %p193 = por %p191, %p192
      %p194 = scmp.ne.s32.totalorder %s183, %s184
      %p195 = scmp.eq.s32.totalorder %s23, 0
      %p196 = por %p194, %p195
      %p197 = scmp.ne.s32.totalorder %s183, %s184
      %p198 = scmp.eq.s32.totalorder %s24, 1
      %p199 = por %p197, %p198
      %p201 = scmp.ne.s32.totalorder %s184, %s200
      %p202 = scmp.eq.s32.totalorder %s24, 0
      %p203 = por %p201, %p202
      %p204 = scmp.le.s32.totalorder 1, %s18
      %p205 = scmp.lt.s32.totalorder %s18, 3
      %p206 = pnand %p204, %p205
      %p207 = pneg %p206
      // Predicated region
      $region9: #{tpu_custom_call.1} parent=5 // pred_check
        _
      $region10: #{tpu_custom_call.1} parent=5 // pred_check_branch
        %209 = sbr.rel (%p206) target = $region12
      $region11: #{tpu_custom_call.1} parent=5 // pred_region
        %s210 = ssub.s32 %s18, 1
        // Predicated region
        $region13: #{tpu_custom_call.1} parent=11 // pred_check
          %p211 = pneg %p65
        $region14: #{tpu_custom_call.1} parent=11 // pred_check_branch
          %213 = sbr.rel (%p211) target = $region16
        $region15: #{tpu_custom_call.1} parent=11 // pred_region
          _
        $region16: #{tpu_custom_call.1} parent=11 // pred_fallthru
          _
        // Predicated region
        $region17: #{tpu_custom_call.1} parent=11 // pred_check
          %p214 = pneg %p86
        $region18: #{tpu_custom_call.1} parent=11 // pred_check_branch
          %216 = sbr.rel (%p214) target = $region20
        $region19: #{tpu_custom_call.1} parent=11 // pred_region
          _
        $region20: #{tpu_custom_call.1} parent=11 // pred_fallthru
          _
        // Predicated region
        $region21: #{tpu_custom_call.1} parent=11 // pred_check
          %p217 = pneg %p107
        $region22: #{tpu_custom_call.1} parent=11 // pred_check_branch
          %219 = sbr.rel (%p217) target = $region24
        $region23: #{tpu_custom_call.1} parent=11 // pred_region
          _
        $region24: #{tpu_custom_call.1} parent=11 // pred_fallthru
          _
        // Predicated region
        $region25: #{tpu_custom_call.1} parent=11 // pred_check
          %p220 = pneg %p128
        $region26: #{tpu_custom_call.1} parent=11 // pred_check_branch
          %222 = sbr.rel (%p220) target = $region28
        $region27: #{tpu_custom_call.1} parent=11 // pred_region
          _
        $region28: #{tpu_custom_call.1} parent=11 // pred_fallthru
          _
        // Predicated region
        $region29: #{tpu_custom_call.1} parent=11 // pred_check
          %p223 = pneg %p149
        $region30: #{tpu_custom_call.1} parent=11 // pred_check_branch
          %225 = sbr.rel (%p223) target = $region32
        $region31: #{tpu_custom_call.1} parent=11 // pred_region
          _
        $region32: #{tpu_custom_call.1} parent=11 // pred_fallthru
          _
        // Predicated region
        $region33: #{tpu_custom_call.1} parent=11 // pred_check
          %p226 = pneg %p170
        $region34: #{tpu_custom_call.1} parent=11 // pred_check_branch
          %228 = sbr.rel (%p226) target = $region36
        $region35: #{tpu_custom_call.1} parent=11 // pred_region
          _
        $region36: #{tpu_custom_call.1} parent=11 // pred_fallthru
          _
      $region12: #{tpu_custom_call.1} parent=5 // pred_fallthru
        _
      %p229 = scmp.lt.s32.totalorder %s18, 2
      // Predicated region
      $region37: #{tpu_custom_call.1} parent=5 // pred_check
        %p230 = pneg %p229
      $region38: #{tpu_custom_call.1} parent=5 // pred_check_branch
        %232 = sbr.rel (%p230) target = $region40
      $region39: #{tpu_custom_call.1} parent=5 // pred_region
        // Predicated region
        $region41: #{tpu_custom_call.1} parent=39 // pred_check
          %p233 = pneg %p38
        $region42: #{tpu_custom_call.1} parent=39 // pred_check_branch
          %235 = sbr.rel (%p233) target = $region44
        $region43: #{tpu_custom_call.1} parent=39 // pred_region
          %s236 = smul.u32 32, %s18
          %p237 = scmp.lt.s32.totalorder %s236, 63
          %s238 = scalar_select %p237, %s236, 63
          %s239 = smul.addr %s238, 8
          %s240 = scalar_lea.vmem %s0, %s239
          %s241 = smul.u32 32, %s18
        $region44: #{tpu_custom_call.1} parent=39 // pred_fallthru
          _
      $region40: #{tpu_custom_call.1} parent=5 // pred_fallthru
        _
      %p242 = scmp.le.s32.totalorder 1, %s18
      %p243 = scmp.lt.s32.totalorder %s18, 3
      %p244 = pnand %p242, %p243
      %p245 = pneg %p244
      // Predicated region
      $region45: #{tpu_custom_call.1} parent=5 // pred_check
        _
      $region46: #{tpu_custom_call.1} parent=5 // pred_check_branch
        %247 = sbr.rel (%p244) target = $region48
      $region47: #{tpu_custom_call.1} parent=5 // pred_region
        %s248 = ssub.s32 %s18, 1
        %s249 = smul.u32 32, %s23
        %p250 = scmp.lt.s32.totalorder %s249, 63
        %s251 = scalar_select %p250, %s249, 63
        %s252 = smul.addr %s251, 8
        %s253 = scalar_lea.vmem %s0, %s252
        %p254 = pneg %p44
        %p255 = pneg %p41
        %p256 = pneg %p65
        %p257 = pneg %p62
        %p258 = pneg %p86
        %p259 = pneg %p83
        %p260 = pneg %p107
        %p261 = pneg %p104
        %p262 = pneg %p128
        %p263 = pneg %p125
        %p264 = pneg %p149
        %p265 = pneg %p146
        %p266 = pneg %p170
        %p267 = pneg %p167
        %p268 = pneg %p196
        %p269 = pneg %p193
        %s270 = sand.u32 %s183, 1
        %s271 = scalar_lea.sflag [#allocation4], %s270
        %s272 = sand.u32 %s183, 1
        %s273 = smul.addr %s272, 2
        %s274 = scalar_lea.vmem [#allocation3], %s273
        %s275 = smul.u32 32, %s23
        %p276 = scmp.lt.s32.totalorder %s275, 63
        %s277 = scalar_select %p276, %s275, 63
        %s278 = smul.addr %s277, 8
        %s279 = scalar_lea.vmem %s0, %s278
        %s280 = smul.u32 32, %s23
        %s281 = smul.u32 2, %s23
        %v282 = vld [vmem:[%s279] sm:$0xff]
        %v283 = vld [vmem:[%s279 + $0x8] sm:$0xff]
        %v284 = vld [vmem:[%s279 + $0x10] sm:$0xff]
        %v285 = vld [vmem:[%s279 + $0x18] sm:$0xff]
        %v286 = vld [vmem:[%s279 + $0x20] sm:$0xff]
        %v287 = vld [vmem:[%s279 + $0x28] sm:$0xff]
        %v288 = vld [vmem:[%s279 + $0x30] sm:$0xff]
        %v289 = vld [vmem:[%s279 + $0x38] sm:$0xff]
        %v290 = vld [vmem:[%s279 + $0x40] sm:$0xff]
        %v291 = vld [vmem:[%s279 + $0x48] sm:$0xff]
        %v292 = vld [vmem:[%s279 + $0x50] sm:$0xff]
        %v293 = vld [vmem:[%s279 + $0x58] sm:$0xff]
        %v294 = vld [vmem:[%s279 + $0x60] sm:$0xff]
        %v295 = vld [vmem:[%s279 + $0x68] sm:$0xff]
        %v296 = vld [vmem:[%s279 + $0x70] sm:$0xff]
        %v297 = vld [vmem:[%s279 + $0x78] sm:$0xff]
        %v298 = vld [vmem:[%s279 + $0x80] sm:$0xff]
        %v299 = vld [vmem:[%s279 + $0x88] sm:$0xff]
        %v300 = vld [vmem:[%s279 + $0x90] sm:$0xff]
        %v301 = vld [vmem:[%s279 + $0x98] sm:$0xff]
        %v302 = vld [vmem:[%s279 + $0xa0] sm:$0xff]
        %v303 = vld [vmem:[%s279 + $0xa8] sm:$0xff]
        %v304 = vld [vmem:[%s279 + $0xb0] sm:$0xff]
        %v305 = vld [vmem:[%s279 + $0xb8] sm:$0xff]
        %v306 = vld [vmem:[%s279 + $0xc0] sm:$0xff]
        %v307 = vld [vmem:[%s279 + $0xc8] sm:$0xff]
        %v308 = vld [vmem:[%s279 + $0xd0] sm:$0xff]
        %v309 = vld [vmem:[%s279 + $0xd8] sm:$0xff]
        %v310 = vld [vmem:[%s279 + $0xe0] sm:$0xff]
        %v311 = vld [vmem:[%s279 + $0xe8] sm:$0xff]
        %v312 = vld [vmem:[%s279 + $0xf0] sm:$0xff]
        %v313 = vld [vmem:[%s279 + $0xf8] sm:$0xff]
        %v314 = vld [vmem:[%s1] sm:$0xff]
        %v315 = vld [vmem:[%s1 + $0x8] sm:$0xff]
        %v316 = vld [vmem:[%s1 + $0x10] sm:$0xff]
        %v317 = vld [vmem:[%s1 + $0x18] sm:$0xff]
        %v318 = vld [vmem:[%s2] sm:$0xff]
        %v319 = vld [vmem:[%s2 + $0x8] sm:$0xff]
        %v320 = vld [vmem:[%s2 + $0x10] sm:$0xff]
        %v321 = vld [vmem:[%s2 + $0x18] sm:$0xff]
        %323 = vset.pattern.permute.xlu0 0
        %324 = vperm.xlu0 %323, %v318
        %v325 = vpop.permute.xlu0 %324
        %328 = vset.pattern.permute.xlu0 0
        %329 = vperm.xlu0 %328, %v319
        %v330 = vpop.permute.xlu0 %329
        %333 = vset.pattern.permute.xlu0 0
        %334 = vperm.xlu0 %333, %v320
        %v335 = vpop.permute.xlu0 %334
        %338 = vset.pattern.permute.xlu0 0
        %339 = vperm.xlu0 %338, %v321
        %v340 = vpop.permute.xlu0 %339
        %vm342 = vcmask 31744
        %v344 = vsel %vm342, %v314, 0
        %v347 = vsel %vm342, %v315, 0
        %v350 = vsel %vm342, %v316, 0
        %v353 = vsel %vm342, %v317, 0
        %v356 = vsel %vm342, %v282, 0
        %v359 = vsel %vm342, %v283, 0
        %v362 = vsel %vm342, %v284, 0
        %v365 = vsel %vm342, %v285, 0
        %v368 = vsel %vm342, %v286, 0
        %v371 = vsel %vm342, %v287, 0
        %v374 = vsel %vm342, %v288, 0
        %v377 = vsel %vm342, %v289, 0
        %v380 = vsel %vm342, %v290, 0
        %v383 = vsel %vm342, %v291, 0
        %v386 = vsel %vm342, %v292, 0
        %v389 = vsel %vm342, %v293, 0
        %v392 = vsel %vm342, %v294, 0
        %v395 = vsel %vm342, %v295, 0
        %v398 = vsel %vm342, %v296, 0
        %v401 = vsel %vm342, %v297, 0
        %v404 = vsel %vm342, %v298, 0
        %v407 = vsel %vm342, %v299, 0
        %v410 = vsel %vm342, %v300, 0
        %v413 = vsel %vm342, %v301, 0
        %v416 = vsel %vm342, %v302, 0
        %v419 = vsel %vm342, %v303, 0
        %v422 = vsel %vm342, %v304, 0
        %v425 = vsel %vm342, %v305, 0
        %v428 = vsel %vm342, %v306, 0
        %v431 = vsel %vm342, %v307, 0
        %v434 = vsel %vm342, %v308, 0
        %v437 = vsel %vm342, %v309, 0
        %v440 = vsel %vm342, %v310, 0
        %v443 = vsel %vm342, %v311, 0
        %v446 = vsel %vm342, %v312, 0
        %v449 = vsel %vm342, %v313, 0
        %451 = vmatpush.xpose.msra.mxu0 %v401
        %452 = vmatpush.xpose.msra.mxu0 %v398
        %453 = vmatpush.xpose.msra.mxu0 %v395
        %454 = vmatpush.xpose.msra.mxu0 %v392
        %455 = vmatpush.xpose.msra.mxu0 %v389
        %456 = vmatpush.xpose.msra.mxu0 %v386
        %457 = vmatpush.xpose.msra.mxu0 %v383
        %458 = vmatpush.xpose.msra.mxu0 %v380
        %459 = vmatpush.xpose.msra.mxu0 %v377
        %460 = vmatpush.xpose.msra.mxu0 %v374
        %461 = vmatpush.xpose.msra.mxu0 %v371
        %462 = vmatpush.xpose.msra.mxu0 %v368
        %463 = vmatpush.xpose.msra.mxu0 %v365
        %464 = vmatpush.xpose.msra.mxu0 %v362
        %465 = vmatpush.xpose.msra.mxu0 %v359
        %466 = vmatpush.xpose.msra.mxu0 %v356
        %467 = vmatmul.f32.gmra.mxu0 %v344
        %v468 = vpop.f32.mrf.mxu0
        %v469 = vadd.f32 %v325, %v468
        %470 = vmatmul.f32.gmra.mxu0 %v347
        %v471 = vpop.f32.mrf.mxu0
        %v472 = vadd.f32 %v330, %v471
        %473 = vmatmul.f32.gmra.mxu0 %v350
        %v474 = vpop.f32.mrf.mxu0
        %v475 = vadd.f32 %v335, %v474
        %476 = vmatmul.f32.gmra.mxu0 %v353
        %v477 = vpop.f32.mrf.mxu0
        %v478 = vadd.f32 %v340, %v477
        %479 = vdwg.mxu0
        %480 = vmatpush.xpose.msra.mxu0 %v449
        %481 = vmatpush.xpose.msra.mxu0 %v446
        %482 = vmatpush.xpose.msra.mxu0 %v443
        %483 = vmatpush.xpose.msra.mxu0 %v440
        %484 = vmatpush.xpose.msra.mxu0 %v437
        %485 = vmatpush.xpose.msra.mxu0 %v434
        %486 = vmatpush.xpose.msra.mxu0 %v431
        %487 = vmatpush.xpose.msra.mxu0 %v428
        %488 = vmatpush.xpose.msra.mxu0 %v425
        %489 = vmatpush.xpose.msra.mxu0 %v422
        %490 = vmatpush.xpose.msra.mxu0 %v419
        %491 = vmatpush.xpose.msra.mxu0 %v416
        %492 = vmatpush.xpose.msra.mxu0 %v413
        %493 = vmatpush.xpose.msra.mxu0 %v410
        %494 = vmatpush.xpose.msra.mxu0 %v407
        %495 = vmatpush.xpose.msra.mxu0 %v404
        %496 = vmatmul.f32.gmra.mxu0 %v344
        %v497 = vpop.f32.mrf.mxu0
        %v498 = vadd.f32 %v325, %v497
        %499 = vmatmul.f32.gmra.mxu0 %v347
        %v500 = vpop.f32.mrf.mxu0
        %v501 = vadd.f32 %v330, %v500
        %502 = vmatmul.f32.gmra.mxu0 %v350
        %v503 = vpop.f32.mrf.mxu0
        %v504 = vadd.f32 %v335, %v503
        %505 = vmatmul.f32.gmra.mxu0 %v353
        %v506 = vpop.f32.mrf.mxu0
        %v507 = vadd.f32 %v340, %v506
        %508 = vdwg.mxu0
        %v509 = vmax.f32 %v469, 0.0
        %v510 = vmax.f32 %v498, 0.0
        %v511 = vmax.f32 %v472, 0.0
        %v512 = vmax.f32 %v501, 0.0
        %v513 = vmax.f32 %v475, 0.0
        %v514 = vmax.f32 %v504, 0.0
        %v515 = vmax.f32 %v478, 0.0
        %v516 = vmax.f32 %v507, 0.0
        %v517 = vld [vmem:[%s3] sm:$0xff]
        %v518 = vld [vmem:[%s3 + $0x8] sm:$0xff]
        %v519 = vld [vmem:[%s3 + $0x10] sm:$0xff]
        %v520 = vld [vmem:[%s3 + $0x18] sm:$0xff]
        %v521 = vld [vmem:[%s4] sm:$0xff]
        %v522 = vld [vmem:[%s4 + $0x8] sm:$0xff]
        %v523 = vld [vmem:[%s4 + $0x10] sm:$0xff]
        %v524 = vld [vmem:[%s4 + $0x18] sm:$0xff]
        %526 = vset.pattern.permute.xlu0 0
        %527 = vperm.xlu0 %526, %v521
        %v528 = vpop.permute.xlu0 %527
        %531 = vset.pattern.permute.xlu0 0
        %532 = vperm.xlu0 %531, %v522
        %v533 = vpop.permute.xlu0 %532
        %536 = vset.pattern.permute.xlu0 0
        %537 = vperm.xlu0 %536, %v523
        %v538 = vpop.permute.xlu0 %537
        %541 = vset.pattern.permute.xlu0 0
        %542 = vperm.xlu0 %541, %v524
        %v543 = vpop.permute.xlu0 %542
        %vm545 = vcmask 261120
        %v547 = vsel %vm545, %v517, 0
        %v550 = vsel %vm545, %v518, 0
        %v553 = vsel %vm545, %v519, 0
        %v556 = vsel %vm545, %v520, 0
        %558 = vmatpush.msra.mxu0 0.0
        %559 = vmatpush.msra.mxu0 0.0
        %560 = vmatpush.msra.mxu0 0.0
        %561 = vmatpush.msra.mxu0 0.0
        %562 = vmatpush.msra.mxu0 0.0
        %563 = vmatpush.msra.mxu0 0.0
        %564 = vmatpush.msra.mxu0 0.0
        %565 = vmatpush.msra.mxu0 0.0
        %566 = vmatpush.msra.mxu0 0.0
        %567 = vmatpush.msra.mxu0 0.0
        %568 = vmatpush.msra.mxu0 0.0
        %569 = vmatpush.msra.mxu0 0.0
        %570 = vmatpush.msra.mxu0 %v515
        %571 = vmatpush.msra.mxu0 %v513
        %572 = vmatpush.msra.mxu0 %v511
        %573 = vmatpush.msra.mxu0 %v509
        %574 = vmatmul.f32.gmra.mxu0 %v547
        %v575 = vpop.f32.mrf.mxu0
        %v576 = vadd.f32 %v528, %v575
        %577 = vmatmul.f32.gmra.mxu0 %v550
        %v578 = vpop.f32.mrf.mxu0
        %v579 = vadd.f32 %v533, %v578
        %580 = vmatmul.f32.gmra.mxu0 %v553
        %v581 = vpop.f32.mrf.mxu0
        %v582 = vadd.f32 %v538, %v581
        %583 = vmatmul.f32.gmra.mxu0 %v556
        %v584 = vpop.f32.mrf.mxu0
        %v585 = vadd.f32 %v543, %v584
        %586 = vdwg.mxu0
        %587 = vmatpush.msra.mxu0 0.0
        %588 = vmatpush.msra.mxu0 0.0
        %589 = vmatpush.msra.mxu0 0.0
        %590 = vmatpush.msra.mxu0 0.0
        %591 = vmatpush.msra.mxu0 0.0
        %592 = vmatpush.msra.mxu0 0.0
        %593 = vmatpush.msra.mxu0 0.0
        %594 = vmatpush.msra.mxu0 0.0
        %595 = vmatpush.msra.mxu0 0.0
        %596 = vmatpush.msra.mxu0 0.0
        %597 = vmatpush.msra.mxu0 0.0
        %598 = vmatpush.msra.mxu0 0.0
        %599 = vmatpush.msra.mxu0 %v516
        %600 = vmatpush.msra.mxu0 %v514
        %601 = vmatpush.msra.mxu0 %v512
        %602 = vmatpush.msra.mxu0 %v510
        %603 = vmatmul.f32.gmra.mxu0 %v547
        %v604 = vpop.f32.mrf.mxu0
        %v605 = vadd.f32 %v528, %v604
        %606 = vmatmul.f32.gmra.mxu0 %v550
        %v607 = vpop.f32.mrf.mxu0
        %v608 = vadd.f32 %v533, %v607
        %609 = vmatmul.f32.gmra.mxu0 %v553
        %v610 = vpop.f32.mrf.mxu0
        %v611 = vadd.f32 %v538, %v610
        %612 = vmatmul.f32.gmra.mxu0 %v556
        %v613 = vpop.f32.mrf.mxu0
        %v614 = vadd.f32 %v543, %v613
        %615 = vdwg.mxu0
        %v616 = vmax.f32 %v576, 0.0
        %v617 = vmax.f32 %v605, 0.0
        %v618 = vmax.f32 %v579, 0.0
        %v619 = vmax.f32 %v608, 0.0
        %v620 = vmax.f32 %v582, 0.0
        %v621 = vmax.f32 %v611, 0.0
        %v622 = vmax.f32 %v585, 0.0
        %v623 = vmax.f32 %v614, 0.0
        %v624 = vld [vmem:[%s5] sm:$0xff]
        %v625 = vld [vmem:[%s5 + $0x8] sm:$0xff]
        %v626 = vld [vmem:[%s5 + $0x10] sm:$0xff]
        %v627 = vld [vmem:[%s5 + $0x18] sm:$0xff]
        %v628 = vld [vmem:[#allocation2] sm:$0x1]
        %630 = vset.pattern.permute.xlu0 0
        %631 = vperm.xlu0 %630, %v624
        %v632 = vpop.permute.xlu0 %631
        %635 = vset.pattern.permute.xlu0 0
        %636 = vperm.xlu0 %635, %v625
        %v637 = vpop.permute.xlu0 %636
        %640 = vset.pattern.permute.xlu0 0
        %641 = vperm.xlu0 %640, %v626
        %v642 = vpop.permute.xlu0 %641
        %645 = vset.pattern.permute.xlu0 0
        %646 = vperm.xlu0 %645, %v627
        %v647 = vpop.permute.xlu0 %646
        %v649 = vmul.f32 %v616, %v632
        %v650 = vmul.f32 %v617, %v632
        %v651 = vmul.f32 %v618, %v637
        %v652 = vmul.f32 %v619, %v637
        %v653 = vmul.f32 %v620, %v642
        %v654 = vmul.f32 %v621, %v642
        %v655 = vmul.f32 %v622, %v647
        %v656 = vmul.f32 %v623, %v647
        %v657 = vadd.f32 %v649, %v651
        %v658 = vadd.f32 %v657, %v653
        %v659 = vadd.f32 %v658, %v655
        %v660 = vrot.slane %v659, 4
        %v661 = vadd.f32 %v659, %v660
        %v662 = vrot.slane %v661, 2
        %v663 = vadd.f32 %v661, %v662
        %v664 = vrot.slane %v663, 1
        %v665 = vadd.f32 %v663, %v664
        %v666 = vadd.f32 %v650, %v652
        %v667 = vadd.f32 %v666, %v654
        %v668 = vadd.f32 %v667, %v656
        %v669 = vrot.slane %v668, 4
        %v670 = vadd.f32 %v668, %v669
        %v671 = vrot.slane %v670, 2
        %v672 = vadd.f32 %v670, %v671
        %v673 = vrot.slane %v672, 1
        %v674 = vadd.f32 %v672, %v673
        %676 = vset.pattern.permute.xlu0 0
        %677 = vperm.xlu0 %676, %v628
        %v678 = vpop.permute.xlu0 %677
        %v680 = vperm.slane %v678, 0
        %v681 = vadd.f32 %v665, %v680
        %v682 = vadd.f32 %v674, %v680
        %v685 = vrot.slane %v682, 7
        %vm686 = vcmask 1040384
        %v687 = vsel %vm686, %v681, %v685
        %v689 = vlaneseq
        %vm690 = vcmp.ge.s32.totalorder %v689, 0
        %vm691 = vcmp.lt.s32.totalorder %v689, 256
        %vm692 = vmand %vm690, %vm691
        %693 = vst.msk [vmem:[%s274] sm:$0x3] %vm692, %v687
        %s694 = sand.u32 %s183, 1
        %s695 = scalar_lea.sflag [#allocation4], %s694
        %s696 = sand.u32 %s183, 1
        %s697 = smul.addr %s696, 2
        %s698 = scalar_lea.vmem [#allocation3], %s697
        // Predicated region
        $region49: #{tpu_custom_call.1} parent=47 // pred_check
          %p699 = pneg %p193
        $region50: #{tpu_custom_call.1} parent=47 // pred_check_branch
          %701 = sbr.rel (%p699) target = $region52
        $region51: #{tpu_custom_call.1} parent=47 // pred_region
          %s702 = smul.u32 2, %s23
          %704 = vsyncadd %s695, 0
          %s705 = scalar_lea.hbm %s7, %s702
          %s707 = sshll.u32 %s698, 4
          %s708 = int_to_ptr.vmem [resolvable:$true] %s707
          %s709 = sshll.u32 %s705, 4
          %s710 = int_to_ptr.hbm [resolvable:$true] %s709
          %712 = dma.vmem_to_hbm [thread:$0]  %s708, 32, %s710, %s695
        $region52: #{tpu_custom_call.1} parent=47 // pred_fallthru
          _
      $region48: #{tpu_custom_call.1} parent=5 // pred_fallthru
        _
      %p713 = scmp.le.s32.totalorder 2, %s18
      // Predicated region
      $region53: #{tpu_custom_call.1} parent=5 // pred_check
        %p714 = pneg %p713
      $region54: #{tpu_custom_call.1} parent=5 // pred_check_branch
        %716 = sbr.rel (%p714) target = $region56
      $region55: #{tpu_custom_call.1} parent=5 // pred_region
        %s717 = ssub.s32 %s18, 2
        // Predicated region
        $region57: #{tpu_custom_call.1} parent=55 // pred_check
          %p718 = pneg %p199
        $region58: #{tpu_custom_call.1} parent=55 // pred_check_branch
          %720 = sbr.rel (%p718) target = $region60
        $region59: #{tpu_custom_call.1} parent=55 // pred_region
          %s721 = sand.u32 %s184, 1
          %s722 = scalar_lea.sflag [#allocation4], %s721
          %s723 = sand.u32 %s184, 1
          %s724 = smul.addr %s723, 2
          %s725 = scalar_lea.vmem [#allocation3], %s724
          %727 = dma.done %s722, 32
        $region60: #{tpu_custom_call.1} parent=55 // pred_fallthru
          _
      $region56: #{tpu_custom_call.1} parent=5 // pred_fallthru
        _
    $region6: #{tpu_custom_call.1} parent=1 // loop_footer
      %s22 = sadd.s32 1, %s18
    $region7: #{tpu_custom_call.1} parent=1 // loop_footer_branch
      %17 = sbr.rel target = $region3
    $region8: #{tpu_custom_call.1} parent=1 // loop_exit
      _
    %728 = vsyncpa [#allocation4], 1
    %s729 = scalar_lea.sflag [#allocation4], 1
    %730 = vsyncpa %s729, 1

</llo_original>
